<compile_context>
chip_gen: v7x
topology: tpu7x:2x2x1
jax: 0.10.0
libtpu: 0.0.40
codegen_flags: <defaults>
</compile_context>

<pallas_src>
import jax
import jax.numpy as jnp
from jax.experimental import pallas as pl
from jax.experimental.pallas import tpu as pltpu


def _round_up(n, m):
    return ((n + m - 1) // m) * m


def mlp_kernel(x_ref, w1_ref, b1_ref, w2_ref, b2_ref, w3_ref, b3_ref, o_ref):
    # Cast the x tile to the MXU compute dtype on the VPU (in-kernel cast keeps
    # HBM traffic at one f32 read instead of a wrapper-side f32->bf16 round trip).
    x = x_ref[...].astype(w1_ref.dtype)

    # fc1 + ReLU  (MXU matmul, f32 accumulation; bias-add / ReLU in f32)
    h1 = jnp.dot(x, w1_ref[...], preferred_element_type=jnp.float32)
    h1 = jnp.maximum(h1 + b1_ref[...], 0.0)

    # fc2 + ReLU
    h2 = jnp.dot(h1.astype(w2_ref.dtype), w2_ref[...],
                 preferred_element_type=jnp.float32)
    h2 = jnp.maximum(h2 + b2_ref[...], 0.0)

    # fc3: natural-orientation (tm, fold*64) @ (fold*64, fold) matmul; the
    # contraction is over h2's last dim, so no XLU transpose is generated.
    h3 = jnp.dot(h2.astype(w3_ref.dtype), w3_ref[...],
                 preferred_element_type=jnp.float32)
    o_ref[...] = (h3 + b3_ref[...]).astype(o_ref.dtype)


def _choose_tile(rows, tm_target):
    """Pick the folded-row tile size.

    Tiny batches get a single tile (rounded to a sublane-safe multiple of 16).
    Larger batches get the biggest tile <= tm_target that still yields >= ~4
    grid steps, so v7x's two TensorCores both get work via the "parallel" grid
    axis (no effect on v5e/v6e, which have a single TensorCore).
    """
    r_min = _round_up(rows, 16)
    if r_min <= 128:
        return r_min
    quarter = _round_up(-(-rows // 4), 128)
    return max(128, min(tm_target, quarter))


def mlp_forward(x, params, *, tm_target=512, compute_dtype=jnp.bfloat16, fold=4):
    """x: (B, input_dim).  params: w1,b1,w2,b2,w3,b3 with w_i stored (in, out).

    tm_target is in *folded* rows (tm_target=512, fold=4 -> 2048 batch rows per
    grid step).  fold packs `fold` batch rows into the lane dim using
    block-diagonal replicated weights; fold=1 recovers the plain layout.
    """
    w1, b1, w2, b2, w3, b3 = (params["w1"], params["b1"], params["w2"],
                              params["b2"], params["w3"], params["b3"])
    B, D = x.shape
    fold = max(int(fold), 1)

    rows = -(-B // fold)                       # folded rows needed
    tm = _choose_tile(rows, tm_target)
    rows_pad = _round_up(rows, tm)
    n_tiles = rows_pad // tm
    b_pad = rows_pad * fold

    x_p = x if b_pad == B else jnp.pad(x, ((0, b_pad - B), (0, 0)))
    x_f = x_p.reshape(rows_pad, fold * D)      # caller dtype; cast in-kernel

    # Block-diagonal replicated weights (tiny: <~0.5 MB even at fold=4) and
    # tiled biases.  In a real deployment these would be precomputed once.
    eye = jnp.eye(fold, dtype=jnp.float32)
    w1f = jnp.kron(eye, w1).astype(compute_dtype)   # (fold*D,   fold*128)
    w2f = jnp.kron(eye, w2).astype(compute_dtype)   # (fold*128, fold*64)
    w3f = jnp.kron(eye, w3).astype(compute_dtype)   # (fold*64,  fold)
    b1f = jnp.tile(b1, (1, fold))                   # biases stay f32
    b2f = jnp.tile(b2, (1, fold))
    b3f = jnp.tile(b3, (1, fold))

    # Weights/biases: full block, same index every step -> VMEM-resident.
    resident = lambda a: pl.BlockSpec(a.shape, lambda i: (0, 0))

    out_f = pl.pallas_call(
        mlp_kernel,
        out_shape=jax.ShapeDtypeStruct((rows_pad, fold), jnp.float32),
        grid_spec=pltpu.PrefetchScalarGridSpec(
            num_scalar_prefetch=0,
            grid=(n_tiles,),
            in_specs=[
                pl.BlockSpec((tm, fold * D), lambda i: (i, 0)),   # x tile (pipelined)
                resident(w1f), resident(b1f),
                resident(w2f), resident(b2f),
                resident(w3f), resident(b3f),
            ],
            out_specs=pl.BlockSpec((tm, fold), lambda i: (i, 0)),
        ),
        compiler_params=pltpu.CompilerParams(
            dimension_semantics=("parallel",),
            vmem_limit_bytes=32 * 1024 * 1024),
    )(x_f, w1f, b1f, w2f, b2f, w3f, b3f)

    # (rows_pad, fold) is row-major-identical to (b_pad, 1): just reshape+slice.
    return out_f.reshape(b_pad, 1)[:B]


def init_mlp_params(key, input_dim):
    """PyTorch nn.Linear default init (U[-1/sqrt(fan_in), 1/sqrt(fan_in)]),
    weights stored as (in_dim, out_dim)."""
    dims = [(input_dim, 128), (128, 64), (64, 1)]
    params = {}
    for i, (fan_in, fan_out) in enumerate(dims, start=1):
        key, kw, kb = jax.random.split(key, 3)
        bound = 1.0 / jnp.sqrt(fan_in)
        params[f"w{i}"] = jax.random.uniform(
            kw, (fan_in, fan_out), jnp.float32, -bound, bound)
        params[f"b{i}"] = jax.random.uniform(
            kb, (1, fan_out), jnp.float32, -bound, bound)
    return params


def mlp_reference(x, params):
    h1 = jnp.maximum(x @ params["w1"] + params["b1"], 0.0)
    h2 = jnp.maximum(h1 @ params["w2"] + params["b2"], 0.0)
    return h2 @ params["w3"] + params["b3"]


if __name__ == "__main__":
    key = jax.random.PRNGKey(0)
    batch, input_dim = 8, 32

    key, kx = jax.random.split(key)
    x = jax.random.normal(kx, (batch, input_dim), jnp.float32)
    params = init_mlp_params(key, input_dim)
    ref = mlp_reference(x, params)

    # Small batch, f32 MXU path (strict numerics).
    out_f32 = jax.block_until_ready(
        mlp_forward(x, params, compute_dtype=jnp.float32))
    assert out_f32.shape == (batch, 1)
    assert jnp.allclose(out_f32, ref, atol=5e-5, rtol=5e-5)

    # Small batch, default bf16 MXU inputs (loose tolerance vs f32 reference).
    out_bf16 = jax.block_until_ready(mlp_forward(x, params))
    assert out_bf16.shape == (batch, 1)
    assert jnp.allclose(out_bf16, ref, atol=0.1, rtol=0.1)

    # Larger batch: exercises the multi-tile pipelined grid, resident weights,
    # fold-by-4 packing, and tail padding/slicing.
    key, kx2 = jax.random.split(key)
    x_big = jax.random.normal(kx2, (1000, input_dim), jnp.float32)
    ref_big = mlp_reference(x_big, params)

    out_big_f32 = jax.block_until_ready(
        mlp_forward(x_big, params, compute_dtype=jnp.float32))
    assert out_big_f32.shape == (1000, 1)
    assert jnp.allclose(out_big_f32, ref_big, atol=1e-4, rtol=1e-4)

    out_big_bf16 = jax.block_until_ready(mlp_forward(x_big, params))
    assert out_big_bf16.shape == (1000, 1)
    assert jnp.allclose(out_big_bf16, ref_big, atol=0.1, rtol=0.1)

    print("KERNEL_OK")
</pallas_src>

<mosaic_0001>
module attributes {stable_mosaic.version = 11 : i64} {
  func.func @mlp_kernel(%arg0: i32, %arg1: memref<16x128xf32, #tpu.memory_space<vmem>>, %arg2: memref<128x512xf32, #tpu.memory_space<vmem>>, %arg3: memref<1x512xf32, #tpu.memory_space<vmem>>, %arg4: memref<512x256xf32, #tpu.memory_space<vmem>>, %arg5: memref<1x256xf32, #tpu.memory_space<vmem>>, %arg6: memref<256x4xf32, #tpu.memory_space<vmem>>, %arg7: memref<1x4xf32, #tpu.memory_space<vmem>>, %arg8: memref<16x4xf32, #tpu.memory_space<vmem>>) attributes {dimension_semantics = [#tpu.dimension_semantics<parallel>], iteration_bounds = array<i64: 1>, scalar_prefetch = 0 : i64, scratch_operands = 0 : i64, tpu.core_type = #tpu.core_type<tc>, window_params = [{transform_indices = @transform_0, window_bounds = array<i64: 16, 128>}, {pipeline_mode = #tpu.pipeline_mode<synchronous>, transform_indices = @transform_1, window_bounds = array<i64: 128, 512>}, {pipeline_mode = #tpu.pipeline_mode<synchronous>, transform_indices = @transform_2, window_bounds = array<i64: 1, 512>}, {pipeline_mode = #tpu.pipeline_mode<synchronous>, transform_indices = @transform_3, window_bounds = array<i64: 512, 256>}, {pipeline_mode = #tpu.pipeline_mode<synchronous>, transform_indices = @transform_4, window_bounds = array<i64: 1, 256>}, {pipeline_mode = #tpu.pipeline_mode<synchronous>, transform_indices = @transform_5, window_bounds = array<i64: 256, 4>}, {pipeline_mode = #tpu.pipeline_mode<synchronous>, transform_indices = @transform_6, window_bounds = array<i64: 1, 4>}, {transform_indices = @transform_7, window_bounds = array<i64: 16, 4>}]} {
    %c0 = arith.constant 0 : index
    %c0_0 = arith.constant 0 : index
    %0 = vector.load %arg1[%c0, %c0_0] : memref<16x128xf32, #tpu.memory_space<vmem>>, vector<16x128xf32>
    %c0_1 = arith.constant 0 : index
    %c0_2 = arith.constant 0 : index
    %1 = vector.load %arg2[%c0_1, %c0_2] : memref<128x512xf32, #tpu.memory_space<vmem>>, vector<128x512xf32>
    %cst = arith.constant dense<0.000000e+00> : vector<16x512xf32>
    %2 = tpu.matmul %0, %1, %cst {dimension_numbers = #tpu.dot_dimension_numbers<[1], [0], [0], [1], [0, 0, 1, 1], [], []>} : vector<16x128xf32>, vector<128x512xf32>, vector<16x512xf32> -> vector<16x512xf32>
    %c0_3 = arith.constant 0 : index
    %c0_4 = arith.constant 0 : index
    %3 = vector.load %arg3[%c0_3, %c0_4] : memref<1x512xf32, #tpu.memory_space<vmem>>, vector<1x512xf32>
    %4 = vector.broadcast %3 : vector<1x512xf32> to vector<16x512xf32>
    %5 = arith.addf %2, %4 : vector<16x512xf32>
    %cst_5 = arith.constant 0.000000e+00 : f32
    %6 = vector.broadcast %cst_5 : f32 to vector<16x512xf32>
    %7 = arith.maximumf %5, %6 : vector<16x512xf32>
    %c0_6 = arith.constant 0 : index
    %c0_7 = arith.constant 0 : index
    %8 = vector.load %arg4[%c0_6, %c0_7] : memref<512x256xf32, #tpu.memory_space<vmem>>, vector<512x256xf32>
    %cst_8 = arith.constant dense<0.000000e+00> : vector<16x256xf32>
    %9 = tpu.matmul %7, %8, %cst_8 {dimension_numbers = #tpu.dot_dimension_numbers<[1], [0], [0], [1], [0, 0, 1, 1], [], []>} : vector<16x512xf32>, vector<512x256xf32>, vector<16x256xf32> -> vector<16x256xf32>
    %c0_9 = arith.constant 0 : index
    %c0_10 = arith.constant 0 : index
    %10 = vector.load %arg5[%c0_9, %c0_10] : memref<1x256xf32, #tpu.memory_space<vmem>>, vector<1x256xf32>
    %11 = vector.broadcast %10 : vector<1x256xf32> to vector<16x256xf32>
    %12 = arith.addf %9, %11 : vector<16x256xf32>
    %cst_11 = arith.constant 0.000000e+00 : f32
    %13 = vector.broadcast %cst_11 : f32 to vector<16x256xf32>
    %14 = arith.maximumf %12, %13 : vector<16x256xf32>
    %c0_12 = arith.constant 0 : index
    %c0_13 = arith.constant 0 : index
    %15 = vector.load %arg6[%c0_12, %c0_13] : memref<256x4xf32, #tpu.memory_space<vmem>>, vector<256x4xf32>
    %cst_14 = arith.constant dense<0.000000e+00> : vector<16x4xf32>
    %16 = tpu.matmul %14, %15, %cst_14 {dimension_numbers = #tpu.dot_dimension_numbers<[1], [0], [0], [1], [0, 0, 1, 1], [], []>} : vector<16x256xf32>, vector<256x4xf32>, vector<16x4xf32> -> vector<16x4xf32>
    %c0_15 = arith.constant 0 : index
    %c0_16 = arith.constant 0 : index
    %17 = vector.load %arg7[%c0_15, %c0_16] : memref<1x4xf32, #tpu.memory_space<vmem>>, vector<1x4xf32>
    %18 = vector.broadcast %17 : vector<1x4xf32> to vector<16x4xf32>
    %19 = arith.addf %16, %18 : vector<16x4xf32>
    %c0_17 = arith.constant 0 : index
    %c0_18 = arith.constant 0 : index
    %20 = vector.load %arg8[%c0_17, %c0_18] : memref<16x4xf32, #tpu.memory_space<vmem>>, vector<16x4xf32>
    tpu.vector_store %arg8[%c0_17, %c0_18], %19 {strides = array<i32>} : memref<16x4xf32, #tpu.memory_space<vmem>>, vector<16x4xf32>,
    return
  }
  func.func @transform_0(%arg0: i32) -> (i32, i32) {
    %c0_i32 = arith.constant 0 : i32
    %c0_i32_0 = arith.constant 0 : i32
    return %arg0, %c0_i32 : i32, i32
  }
  func.func @transform_1(%arg0: i32) -> (i32, i32) {
    %c0_i32 = arith.constant 0 : i32
    %c0_i32_0 = arith.constant 0 : i32
    %c0_i32_1 = arith.constant 0 : i32
    return %c0_i32, %c0_i32_0 : i32, i32
  }
  func.func @transform_2(%arg0: i32) -> (i32, i32) {
    %c0_i32 = arith.constant 0 : i32
    %c0_i32_0 = arith.constant 0 : i32
    %c0_i32_1 = arith.constant 0 : i32
    return %c0_i32, %c0_i32_0 : i32, i32
  }
  func.func @transform_3(%arg0: i32) -> (i32, i32) {
    %c0_i32 = arith.constant 0 : i32
    %c0_i32_0 = arith.constant 0 : i32
    %c0_i32_1 = arith.constant 0 : i32
    return %c0_i32, %c0_i32_0 : i32, i32
  }
  func.func @transform_4(%arg0: i32) -> (i32, i32) {
    %c0_i32 = arith.constant 0 : i32
    %c0_i32_0 = arith.constant 0 : i32
    %c0_i32_1 = arith.constant 0 : i32
    return %c0_i32, %c0_i32_0 : i32, i32
  }
  func.func @transform_5(%arg0: i32) -> (i32, i32) {
    %c0_i32 = arith.constant 0 : i32
    %c0_i32_0 = arith.constant 0 : i32
    %c0_i32_1 = arith.constant 0 : i32
    return %c0_i32, %c0_i32_0 : i32, i32
  }
  func.func @transform_6(%arg0: i32) -> (i32, i32) {
    %c0_i32 = arith.constant 0 : i32
    %c0_i32_0 = arith.constant 0 : i32
    %c0_i32_1 = arith.constant 0 : i32
    return %c0_i32, %c0_i32_0 : i32, i32
  }
  func.func @transform_7(%arg0: i32) -> (i32, i32) {
    %c0_i32 = arith.constant 0 : i32
    %c0_i32_0 = arith.constant 0 : i32
    return %arg0, %c0_i32 : i32, i32
  }
}

</mosaic_0001>

<llo_original>
// kernel: tpu_custom_call.1
$region0: #{tpu_custom_call.1}
  #allocation0 [shape = 'u32[]', space=smem, size = 0x4, offset = 0x4, fixed_abs, tag = 'smem constant byte address 0x4 - core index']
  #allocation1 [shape = 'u32[144,128]{1,0:T(1,128)}', space=vmem, size = 0x12000, scoped, tag = 'internal scratch']
  %s0 = inlined_call_operand.vmem [shape: f32[16,128], index: 0, kind: input, shape index: {}]
  %s1 = inlined_call_operand.hbm [shape: f32[128,512], index: 1, kind: input, shape index: {}]
  %s2 = inlined_call_operand.vmem [shape: f32[1,512], index: 2, kind: input, shape index: {}]
  %s3 = inlined_call_operand.hbm [shape: f32[512,256], index: 3, kind: input, shape index: {}]
  %s4 = inlined_call_operand.vmem [shape: f32[1,256], index: 4, kind: input, shape index: {}]
  %s5 = inlined_call_operand.vmem [shape: f32[256,4], index: 5, kind: input, shape index: {}]
  %s6 = inlined_call_operand.vmem [shape: f32[1,4], index: 6, kind: input, shape index: {}]
  %s7 = inlined_call_operand.vmem [shape: f32[16,4], index: 7, kind: output, shape index: {}]
  %s8 = sld [smem:[#allocation0]]
  $region46: #{tpu_custom_call.1} parent=0
    _
  %s10 = ssub.s32 1, %s8
  %s11 = scalar_select 0, %s10, %s8
  $region1: #{tpu_custom_call.1} parent=0
    #allocation2 [shape = 'u8[262144]{0}', space=vmem, size = 0x40000, scoped, tag = 'input window, operand 1, single buffered']
    #allocation3 [shape = 's32[1]{0}', space=sflag, size = 0x4, scoped, tag = 'scoped memory for tpu_custom_call.1']
    #allocation4 [shape = 'u8[524288]{0}', space=vmem, size = 0x80000, scoped, tag = 'input window, operand 3, single buffered']
    #allocation5 [shape = 's32[1]{0}', space=sflag, size = 0x4, scoped, tag = 'scoped memory for tpu_custom_call.1']
    %12 = vsyncpa [#allocation3], 0
    %13 = vsyncpa [#allocation5], 0
    // Predicated region
    $region2: #{tpu_custom_call.1} parent=1 // pred_check
      _
    $region3: #{tpu_custom_call.1} parent=1 // pred_check_branch
      %15 = sbr.rel (0) target = $region5
    $region4: #{tpu_custom_call.1} parent=1 // pred_region
      _
    $region5: #{tpu_custom_call.1} parent=1 // pred_fallthru
      _
    // Predicated region
    $region6: #{tpu_custom_call.1} parent=1 // pred_check
      _
    $region7: #{tpu_custom_call.1} parent=1 // pred_check_branch
      %17 = sbr.rel (0) target = $region9
    $region8: #{tpu_custom_call.1} parent=1 // pred_region
      %s19 = ssub.s32 8192, 8192
      %20 = vsyncadd [#allocation3], %s19
      %s21 = sshll.u32 [#allocation2], 4
      %s22 = int_to_ptr.vmem [resolvable:$true] %s21
      %27 = dma.hbm_to_vmem [thread:$0]  %s1, 8192, %s22, [#allocation3], 512, 512, 32
    $region9: #{tpu_custom_call.1} parent=1 // pred_fallthru
      _
    // Predicated region
    $region10: #{tpu_custom_call.1} parent=1 // pred_check
      _
    $region11: #{tpu_custom_call.1} parent=1 // pred_check_branch
      %29 = sbr.rel (0) target = $region13
    $region12: #{tpu_custom_call.1} parent=1 // pred_region
      _
    $region13: #{tpu_custom_call.1} parent=1 // pred_fallthru
      _
    // Predicated region
    $region14: #{tpu_custom_call.1} parent=1 // pred_check
      _
    $region15: #{tpu_custom_call.1} parent=1 // pred_check_branch
      %31 = sbr.rel (0) target = $region17
    $region16: #{tpu_custom_call.1} parent=1 // pred_region
      %s33 = ssub.s32 16384, 16384
      %34 = vsyncadd [#allocation5], %s33
      %s35 = sshll.u32 [#allocation4], 4
      %s36 = int_to_ptr.vmem [resolvable:$true] %s35
      %41 = dma.hbm_to_vmem [thread:$0]  %s3, 16384, %s36, [#allocation5], 256, 256, 16
    $region17: #{tpu_custom_call.1} parent=1 // pred_fallthru
      _
    // Predicated region
    $region18: #{tpu_custom_call.1} parent=1 // pred_check
      _
    $region19: #{tpu_custom_call.1} parent=1 // pred_check_branch
      %43 = sbr.rel (0) target = $region21
    $region20: #{tpu_custom_call.1} parent=1 // pred_region
      _
    $region21: #{tpu_custom_call.1} parent=1 // pred_fallthru
      _
    // Predicated region
    $region22: #{tpu_custom_call.1} parent=1 // pred_check
      _
    $region23: #{tpu_custom_call.1} parent=1 // pred_check_branch
      %45 = sbr.rel (0) target = $region25
    $region24: #{tpu_custom_call.1} parent=1 // pred_region
      _
    $region25: #{tpu_custom_call.1} parent=1 // pred_fallthru
      _
    // Predicated region
    $region26: #{tpu_custom_call.1} parent=1 // pred_check
      _
    $region27: #{tpu_custom_call.1} parent=1 // pred_check_branch
      %47 = sbr.rel (0) target = $region29
    $region28: #{tpu_custom_call.1} parent=1 // pred_region
      _
    $region29: #{tpu_custom_call.1} parent=1 // pred_fallthru
      _
    // Predicated region
    $region30: #{tpu_custom_call.1} parent=1 // pred_check
      _
    $region31: #{tpu_custom_call.1} parent=1 // pred_check_branch
      %49 = sbr.rel (0) target = $region33
    $region32: #{tpu_custom_call.1} parent=1 // pred_region
      %50 = dma.done [#allocation3], 8192
    $region33: #{tpu_custom_call.1} parent=1 // pred_fallthru
      _
    // Predicated region
    $region34: #{tpu_custom_call.1} parent=1 // pred_check
      _
    $region35: #{tpu_custom_call.1} parent=1 // pred_check_branch
      %52 = sbr.rel (0) target = $region37
    $region36: #{tpu_custom_call.1} parent=1 // pred_region
      %53 = dma.done [#allocation5], 16384
    $region37: #{tpu_custom_call.1} parent=1 // pred_fallthru
      _
    %v54 = vld [vmem:[%s0] sm:$0xff]
    %v55 = vld [vmem:[%s0 + $0x8] sm:$0xff]
    %v56 = vld [vmem:[#allocation2] sm:$0xff]
    %v57 = vld [vmem:[#allocation2 + $0x8] sm:$0xff]
    %v58 = vld [vmem:[#allocation2 + $0x10] sm:$0xff]
    %v59 = vld [vmem:[#allocation2 + $0x18] sm:$0xff]
    %v60 = vld [vmem:[#allocation2 + $0x20] sm:$0xff]
    %v61 = vld [vmem:[#allocation2 + $0x28] sm:$0xff]
    %v62 = vld [vmem:[#allocation2 + $0x30] sm:$0xff]
    %v63 = vld [vmem:[#allocation2 + $0x38] sm:$0xff]
    %v64 = vld [vmem:[#allocation2 + $0x40] sm:$0xff]
    %v65 = vld [vmem:[#allocation2 + $0x48] sm:$0xff]
    %v66 = vld [vmem:[#allocation2 + $0x50] sm:$0xff]
    %v67 = vld [vmem:[#allocation2 + $0x58] sm:$0xff]
    %v68 = vld [vmem:[#allocation2 + $0x60] sm:$0xff]
    %v69 = vld [vmem:[#allocation2 + $0x68] sm:$0xff]
    %v70 = vld [vmem:[#allocation2 + $0x70] sm:$0xff]
    %v71 = vld [vmem:[#allocation2 + $0x78] sm:$0xff]
    %v72 = vld [vmem:[#allocation2 + $0x80] sm:$0xff]
    %v73 = vld [vmem:[#allocation2 + $0x88] sm:$0xff]
    %v74 = vld [vmem:[#allocation2 + $0x90] sm:$0xff]
    %v75 = vld [vmem:[#allocation2 + $0x98] sm:$0xff]
    %v76 = vld [vmem:[#allocation2 + $0xa0] sm:$0xff]
    %v77 = vld [vmem:[#allocation2 + $0xa8] sm:$0xff]
    %v78 = vld [vmem:[#allocation2 + $0xb0] sm:$0xff]
    %v79 = vld [vmem:[#allocation2 + $0xb8] sm:$0xff]
    %v80 = vld [vmem:[#allocation2 + $0xc0] sm:$0xff]
    %v81 = vld [vmem:[#allocation2 + $0xc8] sm:$0xff]
    %v82 = vld [vmem:[#allocation2 + $0xd0] sm:$0xff]
    %v83 = vld [vmem:[#allocation2 + $0xd8] sm:$0xff]
    %v84 = vld [vmem:[#allocation2 + $0xe0] sm:$0xff]
    %v85 = vld [vmem:[#allocation2 + $0xe8] sm:$0xff]
    %v86 = vld [vmem:[#allocation2 + $0xf0] sm:$0xff]
    %v87 = vld [vmem:[#allocation2 + $0xf8] sm:$0xff]
    %v88 = vld [vmem:[#allocation2 + $0x100] sm:$0xff]
    %v89 = vld [vmem:[#allocation2 + $0x108] sm:$0xff]
    %v90 = vld [vmem:[#allocation2 + $0x110] sm:$0xff]
    %v91 = vld [vmem:[#allocation2 + $0x118] sm:$0xff]
    %v92 = vld [vmem:[#allocation2 + $0x120] sm:$0xff]
    %v93 = vld [vmem:[#allocation2 + $0x128] sm:$0xff]
    %v94 = vld [vmem:[#allocation2 + $0x130] sm:$0xff]
    %v95 = vld [vmem:[#allocation2 + $0x138] sm:$0xff]
    %v96 = vld [vmem:[#allocation2 + $0x140] sm:$0xff]
    %v97 = vld [vmem:[#allocation2 + $0x148] sm:$0xff]
    %v98 = vld [vmem:[#allocation2 + $0x150] sm:$0xff]
    %v99 = vld [vmem:[#allocation2 + $0x158] sm:$0xff]
    %v100 = vld [vmem:[#allocation2 + $0x160] sm:$0xff]
    %v101 = vld [vmem:[#allocation2 + $0x168] sm:$0xff]
    %v102 = vld [vmem:[#allocation2 + $0x170] sm:$0xff]
    %v103 = vld [vmem:[#allocation2 + $0x178] sm:$0xff]
    %v104 = vld [vmem:[#allocation2 + $0x180] sm:$0xff]
    %v105 = vld [vmem:[#allocation2 + $0x188] sm:$0xff]
    %v106 = vld [vmem:[#allocation2 + $0x190] sm:$0xff]
    %v107 = vld [vmem:[#allocation2 + $0x198] sm:$0xff]
    %v108 = vld [vmem:[#allocation2 + $0x1a0] sm:$0xff]
    %v109 = vld [vmem:[#allocation2 + $0x1a8] sm:$0xff]
    %v110 = vld [vmem:[#allocation2 + $0x1b0] sm:$0xff]
    %v111 = vld [vmem:[#allocation2 + $0x1b8] sm:$0xff]
    %v112 = vld [vmem:[#allocation2 + $0x1c0] sm:$0xff]
    %v113 = vld [vmem:[#allocation2 + $0x1c8] sm:$0xff]
    %v114 = vld [vmem:[#allocation2 + $0x1d0] sm:$0xff]
    %v115 = vld [vmem:[#allocation2 + $0x1d8] sm:$0xff]
    %v116 = vld [vmem:[#allocation2 + $0x1e0] sm:$0xff]
    %v117 = vld [vmem:[#allocation2 + $0x1e8] sm:$0xff]
    %v118 = vld [vmem:[#allocation2 + $0x1f0] sm:$0xff]
    %v119 = vld [vmem:[#allocation2 + $0x1f8] sm:$0xff]
    %v120 = vld [vmem:[%s2] sm:$0xf]
    %v122 = vlaneseq
    %v123 = vshrl.u32 %v122, 7
    %v124 = vsub.s32 0, %v123
    %v125 = vrot.slane %v120, %v124
    %v126 = vlaneseq
    %v127 = vshrl.u32 %v126, 7
    %v128 = vsub.s32 1, %v127
    %v129 = vrot.slane %v120, %v128
    %v130 = vlaneseq
    %v131 = vshrl.u32 %v130, 7
    %v132 = vsub.s32 2, %v131
    %v133 = vrot.slane %v120, %v132
    %v134 = vlaneseq
    %v135 = vshrl.u32 %v134, 7
    %v136 = vsub.s32 3, %v135
    %v137 = vrot.slane %v120, %v136
    %142 = vmatprep.subr.mxu0 %v57
    %143 = vmatpush1.msra.mxu0 %v56
    %144 = vmatprep.subr.mxu0 %v61
    %145 = vmatpush1.msra.mxu0 %v60
    %146 = vmatprep.subr.mxu0 %v65
    %147 = vmatpush1.msra.mxu0 %v64
    %148 = vmatprep.subr.mxu0 %v69
    %149 = vmatpush1.msra.mxu0 %v68
    %150 = vmatprep.subr.mxu0 %v73
    %151 = vmatpush1.msra.mxu0 %v72
    %152 = vmatprep.subr.mxu0 %v77
    %153 = vmatpush1.msra.mxu0 %v76
    %154 = vmatprep.subr.mxu0 %v81
    %155 = vmatpush1.msra.mxu0 %v80
    %156 = vmatprep.subr.mxu0 %v85
    %157 = vmatpush1.msra.mxu0 %v84
    %158 = vmatprep.subr.mxu0 %v89
    %159 = vmatpush1.msra.mxu0 %v88
    %160 = vmatprep.subr.mxu0 %v93
    %161 = vmatpush1.msra.mxu0 %v92
    %162 = vmatprep.subr.mxu0 %v97
    %163 = vmatpush1.msra.mxu0 %v96
    %164 = vmatprep.subr.mxu0 %v101
    %165 = vmatpush1.msra.mxu0 %v100
    %166 = vmatprep.subr.mxu0 %v105
    %167 = vmatpush1.msra.mxu0 %v104
    %168 = vmatprep.subr.mxu0 %v109
    %169 = vmatpush1.msra.mxu0 %v108
    %170 = vmatprep.subr.mxu0 %v113
    %171 = vmatpush1.msra.mxu0 %v112
    %172 = vmatprep.subr.mxu0 %v117
    %173 = vmatpush1.msra.mxu0 %v116
    %174 = vmatprep.subr.mxu0 0.0
    %175 = vmatpush1.msra.mxu0 0.0
    %176 = vmatprep.subr.mxu0 0.0
    %177 = vmatpush1.msra.mxu0 0.0
    %178 = vmatprep.subr.mxu0 0.0
    %179 = vmatpush1.msra.mxu0 0.0
    %180 = vmatprep.subr.mxu0 0.0
    %181 = vmatpush1.msra.mxu0 0.0
    %182 = vmatprep.subr.mxu0 0.0
    %183 = vmatpush1.msra.mxu0 0.0
    %184 = vmatprep.subr.mxu0 0.0
    %185 = vmatpush1.msra.mxu0 0.0
    %186 = vmatprep.subr.mxu0 0.0
    %187 = vmatpush1.msra.mxu0 0.0
    %188 = vmatprep.subr.mxu0 0.0
    %189 = vmatpush1.msra.mxu0 0.0
    %190 = vmatprep.subr.mxu0 0.0
    %191 = vmatpush1.msra.mxu0 0.0
    %192 = vmatprep.subr.mxu0 0.0
    %193 = vmatpush1.msra.mxu0 0.0
    %194 = vmatprep.subr.mxu0 0.0
    %195 = vmatpush1.msra.mxu0 0.0
    %196 = vmatprep.subr.mxu0 0.0
    %197 = vmatpush1.msra.mxu0 0.0
    %198 = vmatprep.subr.mxu0 0.0
    %199 = vmatpush1.msra.mxu0 0.0
    %200 = vmatprep.subr.mxu0 0.0
    %201 = vmatpush1.msra.mxu0 0.0
    %202 = vmatprep.subr.mxu0 0.0
    %203 = vmatpush1.msra.mxu0 0.0
    %204 = vmatprep.subr.mxu0 0.0
    %205 = vmatpush1.msra.mxu0 0.0
    %206 = vmatprep.mubr.f32.mxu0 0.0
    %207 = vmatmul.mubr.f32.gmra.mrb[0].mxu0 %v54
    %v208 = vpop.f32.mrb[0].mxu0
    %v209 = vadd.f32 %v125, %v208
    %v210 = vpop.f32.mrb[0].mxu0
    %v211 = vadd.f32 %v129, %v210
    %212 = vmatprep.mubr.f32.mxu0 0.0
    %213 = vmatmul.mubr.f32.gmra.mrb[0].mxu0 %v55
    %v214 = vpop.f32.mrb[0].mxu0
    %v215 = vadd.f32 %v125, %v214
    %v216 = vpop.f32.mrb[0].mxu0
    %v217 = vadd.f32 %v129, %v216
    %218 = vdwg.mxu0
    %219 = vmatprep.subr.mxu0 %v59
    %220 = vmatpush1.msra.mxu0 %v58
    %221 = vmatprep.subr.mxu0 %v63
    %222 = vmatpush1.msra.mxu0 %v62
    %223 = vmatprep.subr.mxu0 %v67
    %224 = vmatpush1.msra.mxu0 %v66
    %225 = vmatprep.subr.mxu0 %v71
    %226 = vmatpush1.msra.mxu0 %v70
    %227 = vmatprep.subr.mxu0 %v75
    %228 = vmatpush1.msra.mxu0 %v74
    %229 = vmatprep.subr.mxu0 %v79
    %230 = vmatpush1.msra.mxu0 %v78
    %231 = vmatprep.subr.mxu0 %v83
    %232 = vmatpush1.msra.mxu0 %v82
    %233 = vmatprep.subr.mxu0 %v87
    %234 = vmatpush1.msra.mxu0 %v86
    %235 = vmatprep.subr.mxu0 %v91
    %236 = vmatpush1.msra.mxu0 %v90
    %237 = vmatprep.subr.mxu0 %v95
    %238 = vmatpush1.msra.mxu0 %v94
    %239 = vmatprep.subr.mxu0 %v99
    %240 = vmatpush1.msra.mxu0 %v98
    %241 = vmatprep.subr.mxu0 %v103
    %242 = vmatpush1.msra.mxu0 %v102
    %243 = vmatprep.subr.mxu0 %v107
    %244 = vmatpush1.msra.mxu0 %v106
    %245 = vmatprep.subr.mxu0 %v111
    %246 = vmatpush1.msra.mxu0 %v110
    %247 = vmatprep.subr.mxu0 %v115
    %248 = vmatpush1.msra.mxu0 %v114
    %249 = vmatprep.subr.mxu0 %v119
    %250 = vmatpush1.msra.mxu0 %v118
    %251 = vmatprep.subr.mxu0 0.0
    %252 = vmatpush1.msra.mxu0 0.0
    %253 = vmatprep.subr.mxu0 0.0
    %254 = vmatpush1.msra.mxu0 0.0
    %255 = vmatprep.subr.mxu0 0.0
    %256 = vmatpush1.msra.mxu0 0.0
    %257 = vmatprep.subr.mxu0 0.0
    %258 = vmatpush1.msra.mxu0 0.0
    %259 = vmatprep.subr.mxu0 0.0
    %260 = vmatpush1.msra.mxu0 0.0
    %261 = vmatprep.subr.mxu0 0.0
    %262 = vmatpush1.msra.mxu0 0.0
    %263 = vmatprep.subr.mxu0 0.0
    %264 = vmatpush1.msra.mxu0 0.0
    %265 = vmatprep.subr.mxu0 0.0
    %266 = vmatpush1.msra.mxu0 0.0
    %267 = vmatprep.subr.mxu0 0.0
    %268 = vmatpush1.msra.mxu0 0.0
    %269 = vmatprep.subr.mxu0 0.0
    %270 = vmatpush1.msra.mxu0 0.0
    %271 = vmatprep.subr.mxu0 0.0
    %272 = vmatpush1.msra.mxu0 0.0
    %273 = vmatprep.subr.mxu0 0.0
    %274 = vmatpush1.msra.mxu0 0.0
    %275 = vmatprep.subr.mxu0 0.0
    %276 = vmatpush1.msra.mxu0 0.0
    %277 = vmatprep.subr.mxu0 0.0
    %278 = vmatpush1.msra.mxu0 0.0
    %279 = vmatprep.subr.mxu0 0.0
    %280 = vmatpush1.msra.mxu0 0.0
    %281 = vmatprep.subr.mxu0 0.0
    %282 = vmatpush1.msra.mxu0 0.0
    %283 = vmatprep.mubr.f32.mxu0 0.0
    %284 = vmatmul.mubr.f32.gmra.mrb[0].mxu0 %v54
    %v285 = vpop.f32.mrb[0].mxu0
    %v286 = vadd.f32 %v133, %v285
    %v287 = vpop.f32.mrb[0].mxu0
    %v288 = vadd.f32 %v137, %v287
    %289 = vmatprep.mubr.f32.mxu0 0.0
    %290 = vmatmul.mubr.f32.gmra.mrb[0].mxu0 %v55
    %v291 = vpop.f32.mrb[0].mxu0
    %v292 = vadd.f32 %v133, %v291
    %v293 = vpop.f32.mrb[0].mxu0
    %v294 = vadd.f32 %v137, %v293
    %295 = vdwg.mxu0
    %v296 = vmax.f32 %v209, 0.0
    %v297 = vmax.f32 %v211, 0.0
    %v298 = vmax.f32 %v286, 0.0
    %v299 = vmax.f32 %v288, 0.0
    %v300 = vmax.f32 %v215, 0.0
    %v301 = vmax.f32 %v217, 0.0
    %v302 = vmax.f32 %v292, 0.0
    %v303 = vmax.f32 %v294, 0.0
    %v304 = vld [vmem:[#allocation4] sm:$0xff]
    %v305 = vld [vmem:[#allocation4 + $0x8] sm:$0xff]
    %v306 = vld [vmem:[#allocation4 + $0x10] sm:$0xff]
    %v307 = vld [vmem:[#allocation4 + $0x18] sm:$0xff]
    %v308 = vld [vmem:[#allocation4 + $0x20] sm:$0xff]
    %v309 = vld [vmem:[#allocation4 + $0x28] sm:$0xff]
    %v310 = vld [vmem:[#allocation4 + $0x30] sm:$0xff]
    %v311 = vld [vmem:[#allocation4 + $0x38] sm:$0xff]
    %v312 = vld [vmem:[#allocation4 + $0x40] sm:$0xff]
    %v313 = vld [vmem:[#allocation4 + $0x48] sm:$0xff]
    %v314 = vld [vmem:[#allocation4 + $0x50] sm:$0xff]
    %v315 = vld [vmem:[#allocation4 + $0x58] sm:$0xff]
    %v316 = vld [vmem:[#allocation4 + $0x60] sm:$0xff]
    %v317 = vld [vmem:[#allocation4 + $0x68] sm:$0xff]
    %v318 = vld [vmem:[#allocation4 + $0x70] sm:$0xff]
    %v319 = vld [vmem:[#allocation4 + $0x78] sm:$0xff]
    %v320 = vld [vmem:[#allocation4 + $0x80] sm:$0xff]
    %v321 = vld [vmem:[#allocation4 + $0x88] sm:$0xff]
    %v322 = vld [vmem:[#allocation4 + $0x90] sm:$0xff]
    %v323 = vld [vmem:[#allocation4 + $0x98] sm:$0xff]
    %v324 = vld [vmem:[#allocation4 + $0xa0] sm:$0xff]
    %v325 = vld [vmem:[#allocation4 + $0xa8] sm:$0xff]
    %v326 = vld [vmem:[#allocation4 + $0xb0] sm:$0xff]
    %v327 = vld [vmem:[#allocation4 + $0xb8] sm:$0xff]
    %v328 = vld [vmem:[#allocation4 + $0xc0] sm:$0xff]
    %v329 = vld [vmem:[#allocation4 + $0xc8] sm:$0xff]
    %v330 = vld [vmem:[#allocation4 + $0xd0] sm:$0xff]
    %v331 = vld [vmem:[#allocation4 + $0xd8] sm:$0xff]
    %v332 = vld [vmem:[#allocation4 + $0xe0] sm:$0xff]
    %v333 = vld [vmem:[#allocation4 + $0xe8] sm:$0xff]
    %v334 = vld [vmem:[#allocation4 + $0xf0] sm:$0xff]
    %v335 = vld [vmem:[#allocation4 + $0xf8] sm:$0xff]
    %v336 = vld [vmem:[#allocation4 + $0x100] sm:$0xff]
    %v337 = vld [vmem:[#allocation4 + $0x108] sm:$0xff]
    %v338 = vld [vmem:[#allocation4 + $0x110] sm:$0xff]
    %v339 = vld [vmem:[#allocation4 + $0x118] sm:$0xff]
    %v340 = vld [vmem:[#allocation4 + $0x120] sm:$0xff]
    %v341 = vld [vmem:[#allocation4 + $0x128] sm:$0xff]
    %v342 = vld [vmem:[#allocation4 + $0x130] sm:$0xff]
    %v343 = vld [vmem:[#allocation4 + $0x138] sm:$0xff]
    %v344 = vld [vmem:[#allocation4 + $0x140] sm:$0xff]
    %v345 = vld [vmem:[#allocation4 + $0x148] sm:$0xff]
    %v346 = vld [vmem:[#allocation4 + $0x150] sm:$0xff]
    %v347 = vld [vmem:[#allocation4 + $0x158] sm:$0xff]
    %v348 = vld [vmem:[#allocation4 + $0x160] sm:$0xff]
    %v349 = vld [vmem:[#allocation4 + $0x168] sm:$0xff]
    %v350 = vld [vmem:[#allocation4 + $0x170] sm:$0xff]
    %v351 = vld [vmem:[#allocation4 + $0x178] sm:$0xff]
    %v352 = vld [vmem:[#allocation4 + $0x180] sm:$0xff]
    %v353 = vld [vmem:[#allocation4 + $0x188] sm:$0xff]
    %v354 = vld [vmem:[#allocation4 + $0x190] sm:$0xff]
    %v355 = vld [vmem:[#allocation4 + $0x198] sm:$0xff]
    %v356 = vld [vmem:[#allocation4 + $0x1a0] sm:$0xff]
    %v357 = vld [vmem:[#allocation4 + $0x1a8] sm:$0xff]
    %v358 = vld [vmem:[#allocation4 + $0x1b0] sm:$0xff]
    %v359 = vld [vmem:[#allocation4 + $0x1b8] sm:$0xff]
    %v360 = vld [vmem:[#allocation4 + $0x1c0] sm:$0xff]
    %v361 = vld [vmem:[#allocation4 + $0x1c8] sm:$0xff]
    %v362 = vld [vmem:[#allocation4 + $0x1d0] sm:$0xff]
    %v363 = vld [vmem:[#allocation4 + $0x1d8] sm:$0xff]
    %v364 = vld [vmem:[#allocation4 + $0x1e0] sm:$0xff]
    %v365 = vld [vmem:[#allocation4 + $0x1e8] sm:$0xff]
    %v366 = vld [vmem:[#allocation4 + $0x1f0] sm:$0xff]
    %v367 = vld [vmem:[#allocation4 + $0x1f8] sm:$0xff]
    %v368 = vld [vmem:[#allocation4 + $0x200] sm:$0xff]
    %v369 = vld [vmem:[#allocation4 + $0x208] sm:$0xff]
    %v370 = vld [vmem:[#allocation4 + $0x210] sm:$0xff]
    %v371 = vld [vmem:[#allocation4 + $0x218] sm:$0xff]
    %v372 = vld [vmem:[#allocation4 + $0x220] sm:$0xff]
    %v373 = vld [vmem:[#allocation4 + $0x228] sm:$0xff]
    %v374 = vld [vmem:[#allocation4 + $0x230] sm:$0xff]
    %v375 = vld [vmem:[#allocation4 + $0x238] sm:$0xff]
    %v376 = vld [vmem:[#allocation4 + $0x240] sm:$0xff]
    %v377 = vld [vmem:[#allocation4 + $0x248] sm:$0xff]
    %v378 = vld [vmem:[#allocation4 + $0x250] sm:$0xff]
    %v379 = vld [vmem:[#allocation4 + $0x258] sm:$0xff]
    %v380 = vld [vmem:[#allocation4 + $0x260] sm:$0xff]
    %v381 = vld [vmem:[#allocation4 + $0x268] sm:$0xff]
    %v382 = vld [vmem:[#allocation4 + $0x270] sm:$0xff]
    %v383 = vld [vmem:[#allocation4 + $0x278] sm:$0xff]
    %v384 = vld [vmem:[#allocation4 + $0x280] sm:$0xff]
    %v385 = vld [vmem:[#allocation4 + $0x288] sm:$0xff]
    %v386 = vld [vmem:[#allocation4 + $0x290] sm:$0xff]
    %v387 = vld [vmem:[#allocation4 + $0x298] sm:$0xff]
    %v388 = vld [vmem:[#allocation4 + $0x2a0] sm:$0xff]
    %v389 = vld [vmem:[#allocation4 + $0x2a8] sm:$0xff]
    %v390 = vld [vmem:[#allocation4 + $0x2b0] sm:$0xff]
    %v391 = vld [vmem:[#allocation4 + $0x2b8] sm:$0xff]
    %v392 = vld [vmem:[#allocation4 + $0x2c0] sm:$0xff]
    %v393 = vld [vmem:[#allocation4 + $0x2c8] sm:$0xff]
    %v394 = vld [vmem:[#allocation4 + $0x2d0] sm:$0xff]
    %v395 = vld [vmem:[#allocation4 + $0x2d8] sm:$0xff]
    %v396 = vld [vmem:[#allocation4 + $0x2e0] sm:$0xff]
    %v397 = vld [vmem:[#allocation4 + $0x2e8] sm:$0xff]
    %v398 = vld [vmem:[#allocation4 + $0x2f0] sm:$0xff]
    %v399 = vld [vmem:[#allocation4 + $0x2f8] sm:$0xff]
    %v400 = vld [vmem:[#allocation4 + $0x300] sm:$0xff]
    %v401 = vld [vmem:[#allocation4 + $0x308] sm:$0xff]
    %v402 = vld [vmem:[#allocation4 + $0x310] sm:$0xff]
    %v403 = vld [vmem:[#allocation4 + $0x318] sm:$0xff]
    %v404 = vld [vmem:[#allocation4 + $0x320] sm:$0xff]
    %v405 = vld [vmem:[#allocation4 + $0x328] sm:$0xff]
    %v406 = vld [vmem:[#allocation4 + $0x330] sm:$0xff]
    %v407 = vld [vmem:[#allocation4 + $0x338] sm:$0xff]
    %v408 = vld [vmem:[#allocation4 + $0x340] sm:$0xff]
    %v409 = vld [vmem:[#allocation4 + $0x348] sm:$0xff]
    %v410 = vld [vmem:[#allocation4 + $0x350] sm:$0xff]
    %v411 = vld [vmem:[#allocation4 + $0x358] sm:$0xff]
    %v412 = vld [vmem:[#allocation4 + $0x360] sm:$0xff]
    %v413 = vld [vmem:[#allocation4 + $0x368] sm:$0xff]
    %v414 = vld [vmem:[#allocation4 + $0x370] sm:$0xff]
    %v415 = vld [vmem:[#allocation4 + $0x378] sm:$0xff]
    %v416 = vld [vmem:[#allocation4 + $0x380] sm:$0xff]
    %v417 = vld [vmem:[#allocation4 + $0x388] sm:$0xff]
    %v418 = vld [vmem:[#allocation4 + $0x390] sm:$0xff]
    %v419 = vld [vmem:[#allocation4 + $0x398] sm:$0xff]
    %v420 = vld [vmem:[#allocation4 + $0x3a0] sm:$0xff]
    %v421 = vld [vmem:[#allocation4 + $0x3a8] sm:$0xff]
    %v422 = vld [vmem:[#allocation4 + $0x3b0] sm:$0xff]
    %v423 = vld [vmem:[#allocation4 + $0x3b8] sm:$0xff]
    %v424 = vld [vmem:[#allocation4 + $0x3c0] sm:$0xff]
    %v425 = vld [vmem:[#allocation4 + $0x3c8] sm:$0xff]
    %v426 = vld [vmem:[#allocation4 + $0x3d0] sm:$0xff]
    %v427 = vld [vmem:[#allocation4 + $0x3d8] sm:$0xff]
    %v428 = vld [vmem:[#allocation4 + $0x3e0] sm:$0xff]
    %v429 = vld [vmem:[#allocation4 + $0x3e8] sm:$0xff]
    %v430 = vld [vmem:[#allocation4 + $0x3f0] sm:$0xff]
    %v431 = vld [vmem:[#allocation4 + $0x3f8] sm:$0xff]
    %v432 = vld [vmem:[%s4] sm:$0x3]
    %v434 = vlaneseq
    %v435 = vshrl.u32 %v434, 7
    %v436 = vsub.s32 0, %v435
    %v437 = vrot.slane %v432, %v436
    %v438 = vlaneseq
    %v439 = vshrl.u32 %v438, 7
    %v440 = vsub.s32 1, %v439
    %v441 = vrot.slane %v432, %v440
    %444 = vmatprep.subr.mxu0 %v305
    %445 = vmatpush1.msra.mxu0 %v304
    %446 = vmatprep.subr.mxu0 %v307
    %447 = vmatpush1.msra.mxu0 %v306
    %448 = vmatprep.subr.mxu0 %v309
    %449 = vmatpush1.msra.mxu0 %v308
    %450 = vmatprep.subr.mxu0 %v311
    %451 = vmatpush1.msra.mxu0 %v310
    %452 = vmatprep.subr.mxu0 %v313
    %453 = vmatpush1.msra.mxu0 %v312
    %454 = vmatprep.subr.mxu0 %v315
    %455 = vmatpush1.msra.mxu0 %v314
    %456 = vmatprep.subr.mxu0 %v317
    %457 = vmatpush1.msra.mxu0 %v316
    %458 = vmatprep.subr.mxu0 %v319
    %459 = vmatpush1.msra.mxu0 %v318
    %460 = vmatprep.subr.mxu0 %v321
    %461 = vmatpush1.msra.mxu0 %v320
    %462 = vmatprep.subr.mxu0 %v323
    %463 = vmatpush1.msra.mxu0 %v322
    %464 = vmatprep.subr.mxu0 %v325
    %465 = vmatpush1.msra.mxu0 %v324
    %466 = vmatprep.subr.mxu0 %v327
    %467 = vmatpush1.msra.mxu0 %v326
    %468 = vmatprep.subr.mxu0 %v329
    %469 = vmatpush1.msra.mxu0 %v328
    %470 = vmatprep.subr.mxu0 %v331
    %471 = vmatpush1.msra.mxu0 %v330
    %472 = vmatprep.subr.mxu0 %v333
    %473 = vmatpush1.msra.mxu0 %v332
    %474 = vmatprep.subr.mxu0 %v335
    %475 = vmatpush1.msra.mxu0 %v334
    %476 = vmatprep.subr.mxu0 %v337
    %477 = vmatpush1.msra.mxu0 %v336
    %478 = vmatprep.subr.mxu0 %v339
    %479 = vmatpush1.msra.mxu0 %v338
    %480 = vmatprep.subr.mxu0 %v341
    %481 = vmatpush1.msra.mxu0 %v340
    %482 = vmatprep.subr.mxu0 %v343
    %483 = vmatpush1.msra.mxu0 %v342
    %484 = vmatprep.subr.mxu0 %v345
    %485 = vmatpush1.msra.mxu0 %v344
    %486 = vmatprep.subr.mxu0 %v347
    %487 = vmatpush1.msra.mxu0 %v346
    %488 = vmatprep.subr.mxu0 %v349
    %489 = vmatpush1.msra.mxu0 %v348
    %490 = vmatprep.subr.mxu0 %v351
    %491 = vmatpush1.msra.mxu0 %v350
    %492 = vmatprep.subr.mxu0 %v353
    %493 = vmatpush1.msra.mxu0 %v352
    %494 = vmatprep.subr.mxu0 %v355
    %495 = vmatpush1.msra.mxu0 %v354
    %496 = vmatprep.subr.mxu0 %v357
    %497 = vmatpush1.msra.mxu0 %v356
    %498 = vmatprep.subr.mxu0 %v359
    %499 = vmatpush1.msra.mxu0 %v358
    %500 = vmatprep.subr.mxu0 %v361
    %501 = vmatpush1.msra.mxu0 %v360
    %502 = vmatprep.subr.mxu0 %v363
    %503 = vmatpush1.msra.mxu0 %v362
    %504 = vmatprep.subr.mxu0 %v365
    %505 = vmatpush1.msra.mxu0 %v364
    %506 = vmatprep.subr.mxu0 %v367
    %507 = vmatpush1.msra.mxu0 %v366
    %508 = vmatprep.mubr.f32.mxu0 %v297
    %509 = vmatmul.mubr.f32.gmra.mrb[0].mxu0 %v296
    %v510 = vpop.f32.mrb[0].mxu0
    %v511 = vadd.f32 %v437, %v510
    %v512 = vpop.f32.mrb[0].mxu0
    %v513 = vadd.f32 %v441, %v512
    %514 = vmatprep.mubr.f32.mxu0 %v301
    %515 = vmatmul.mubr.f32.gmra.mrb[0].mxu0 %v300
    %v516 = vpop.f32.mrb[0].mxu0
    %v517 = vadd.f32 %v437, %v516
    %v518 = vpop.f32.mrb[0].mxu0
    %v519 = vadd.f32 %v441, %v518
    %520 = vdwg.mxu0
    %521 = vmatprep.subr.mxu0 %v369
    %522 = vmatpush1.msra.mxu0 %v368
    %523 = vmatprep.subr.mxu0 %v371
    %524 = vmatpush1.msra.mxu0 %v370
    %525 = vmatprep.subr.mxu0 %v373
    %526 = vmatpush1.msra.mxu0 %v372
    %527 = vmatprep.subr.mxu0 %v375
    %528 = vmatpush1.msra.mxu0 %v374
    %529 = vmatprep.subr.mxu0 %v377
    %530 = vmatpush1.msra.mxu0 %v376
    %531 = vmatprep.subr.mxu0 %v379
    %532 = vmatpush1.msra.mxu0 %v378
    %533 = vmatprep.subr.mxu0 %v381
    %534 = vmatpush1.msra.mxu0 %v380
    %535 = vmatprep.subr.mxu0 %v383
    %536 = vmatpush1.msra.mxu0 %v382
    %537 = vmatprep.subr.mxu0 %v385
    %538 = vmatpush1.msra.mxu0 %v384
    %539 = vmatprep.subr.mxu0 %v387
    %540 = vmatpush1.msra.mxu0 %v386
    %541 = vmatprep.subr.mxu0 %v389
    %542 = vmatpush1.msra.mxu0 %v388
    %543 = vmatprep.subr.mxu0 %v391
    %544 = vmatpush1.msra.mxu0 %v390
    %545 = vmatprep.subr.mxu0 %v393
    %546 = vmatpush1.msra.mxu0 %v392
    %547 = vmatprep.subr.mxu0 %v395
    %548 = vmatpush1.msra.mxu0 %v394
    %549 = vmatprep.subr.mxu0 %v397
    %550 = vmatpush1.msra.mxu0 %v396
    %551 = vmatprep.subr.mxu0 %v399
    %552 = vmatpush1.msra.mxu0 %v398
    %553 = vmatprep.subr.mxu0 %v401
    %554 = vmatpush1.msra.mxu0 %v400
    %555 = vmatprep.subr.mxu0 %v403
    %556 = vmatpush1.msra.mxu0 %v402
    %557 = vmatprep.subr.mxu0 %v405
    %558 = vmatpush1.msra.mxu0 %v404
    %559 = vmatprep.subr.mxu0 %v407
    %560 = vmatpush1.msra.mxu0 %v406
    %561 = vmatprep.subr.mxu0 %v409
    %562 = vmatpush1.msra.mxu0 %v408
    %563 = vmatprep.subr.mxu0 %v411
    %564 = vmatpush1.msra.mxu0 %v410
    %565 = vmatprep.subr.mxu0 %v413
    %566 = vmatpush1.msra.mxu0 %v412
    %567 = vmatprep.subr.mxu0 %v415
    %568 = vmatpush1.msra.mxu0 %v414
    %569 = vmatprep.subr.mxu0 %v417
    %570 = vmatpush1.msra.mxu0 %v416
    %571 = vmatprep.subr.mxu0 %v419
    %572 = vmatpush1.msra.mxu0 %v418
    %573 = vmatprep.subr.mxu0 %v421
    %574 = vmatpush1.msra.mxu0 %v420
    %575 = vmatprep.subr.mxu0 %v423
    %576 = vmatpush1.msra.mxu0 %v422
    %577 = vmatprep.subr.mxu0 %v425
    %578 = vmatpush1.msra.mxu0 %v424
    %579 = vmatprep.subr.mxu0 %v427
    %580 = vmatpush1.msra.mxu0 %v426
    %581 = vmatprep.subr.mxu0 %v429
    %582 = vmatpush1.msra.mxu0 %v428
    %583 = vmatprep.subr.mxu0 %v431
    %584 = vmatpush1.msra.mxu0 %v430
    %585 = vmatprep.mubr.f32.mxu0 %v299
    %586 = vmatmul.mubr.f32.gmra.mrb[0].mxu0 %v298
    %v587 = vpop.f32.mrb[0].mxu0
    %v588 = vadd.f32 %v511, %v587
    %v589 = vpop.f32.mrb[0].mxu0
    %v590 = vadd.f32 %v513, %v589
    %591 = vmatprep.mubr.f32.mxu0 %v303
    %592 = vmatmul.mubr.f32.gmra.mrb[0].mxu0 %v302
    %v593 = vpop.f32.mrb[0].mxu0
    %v594 = vadd.f32 %v517, %v593
    %v595 = vpop.f32.mrb[0].mxu0
    %v596 = vadd.f32 %v519, %v595
    %597 = vdwg.mxu0
    %v598 = vmax.f32 %v588, 0.0
    %v599 = vmax.f32 %v590, 0.0
    %v600 = vmax.f32 %v594, 0.0
    %v601 = vmax.f32 %v596, 0.0
    %v602 = vld [vmem:[%s5] sm:$0xff]
    %v603 = vld [vmem:[%s5 + $0x8] sm:$0xff]
    %v604 = vld [vmem:[%s5 + $0x10] sm:$0xff]
    %v605 = vld [vmem:[%s5 + $0x18] sm:$0xff]
    %v606 = vld [vmem:[%s5 + $0x20] sm:$0xff]
    %v607 = vld [vmem:[%s5 + $0x28] sm:$0xff]
    %v608 = vld [vmem:[%s5 + $0x30] sm:$0xff]
    %v609 = vld [vmem:[%s5 + $0x38] sm:$0xff]
    %v610 = vld [vmem:[%s5 + $0x40] sm:$0xff]
    %v611 = vld [vmem:[%s5 + $0x48] sm:$0xff]
    %v612 = vld [vmem:[%s5 + $0x50] sm:$0xff]
    %v613 = vld [vmem:[%s5 + $0x58] sm:$0xff]
    %v614 = vld [vmem:[%s5 + $0x60] sm:$0xff]
    %v615 = vld [vmem:[%s5 + $0x68] sm:$0xff]
    %v616 = vld [vmem:[%s5 + $0x70] sm:$0xff]
    %v617 = vld [vmem:[%s5 + $0x78] sm:$0xff]
    %v618 = vld [vmem:[%s5 + $0x80] sm:$0xff]
    %v619 = vld [vmem:[%s5 + $0x88] sm:$0xff]
    %v620 = vld [vmem:[%s5 + $0x90] sm:$0xff]
    %v621 = vld [vmem:[%s5 + $0x98] sm:$0xff]
    %v622 = vld [vmem:[%s5 + $0xa0] sm:$0xff]
    %v623 = vld [vmem:[%s5 + $0xa8] sm:$0xff]
    %v624 = vld [vmem:[%s5 + $0xb0] sm:$0xff]
    %v625 = vld [vmem:[%s5 + $0xb8] sm:$0xff]
    %v626 = vld [vmem:[%s5 + $0xc0] sm:$0xff]
    %v627 = vld [vmem:[%s5 + $0xc8] sm:$0xff]
    %v628 = vld [vmem:[%s5 + $0xd0] sm:$0xff]
    %v629 = vld [vmem:[%s5 + $0xd8] sm:$0xff]
    %v630 = vld [vmem:[%s5 + $0xe0] sm:$0xff]
    %v631 = vld [vmem:[%s5 + $0xe8] sm:$0xff]
    %v632 = vld [vmem:[%s5 + $0xf0] sm:$0xff]
    %v633 = vld [vmem:[%s5 + $0xf8] sm:$0xff]
    %v634 = vld [vmem:[%s6] sm:$0x1]
    %v636 = vlaneseq
    %v637 = vshrl.u32 %v636, 7
    %v638 = vsub.s32 0, %v637
    %v639 = vrot.slane %v634, %v638
    %641 = vmatprep.subr.mxu0 0.0
    %642 = vmatpush1.msra.mxu0 %v602
    %643 = vmatprep.subr.mxu0 0.0
    %644 = vmatpush1.msra.mxu0 %v603
    %645 = vmatprep.subr.mxu0 0.0
    %646 = vmatpush1.msra.mxu0 %v604
    %647 = vmatprep.subr.mxu0 0.0
    %648 = vmatpush1.msra.mxu0 %v605
    %649 = vmatprep.subr.mxu0 0.0
    %650 = vmatpush1.msra.mxu0 %v606
    %651 = vmatprep.subr.mxu0 0.0
    %652 = vmatpush1.msra.mxu0 %v607
    %653 = vmatprep.subr.mxu0 0.0
    %654 = vmatpush1.msra.mxu0 %v608
    %655 = vmatprep.subr.mxu0 0.0
    %656 = vmatpush1.msra.mxu0 %v609
    %657 = vmatprep.subr.mxu0 0.0
    %658 = vmatpush1.msra.mxu0 %v610
    %659 = vmatprep.subr.mxu0 0.0
    %660 = vmatpush1.msra.mxu0 %v611
    %661 = vmatprep.subr.mxu0 0.0
    %662 = vmatpush1.msra.mxu0 %v612
    %663 = vmatprep.subr.mxu0 0.0
    %664 = vmatpush1.msra.mxu0 %v613
    %665 = vmatprep.subr.mxu0 0.0
    %666 = vmatpush1.msra.mxu0 %v614
    %667 = vmatprep.subr.mxu0 0.0
    %668 = vmatpush1.msra.mxu0 %v615
    %669 = vmatprep.subr.mxu0 0.0
    %670 = vmatpush1.msra.mxu0 %v616
    %671 = vmatprep.subr.mxu0 0.0
    %672 = vmatpush1.msra.mxu0 %v617
    %673 = vmatprep.subr.mxu0 0.0
    %674 = vmatpush1.msra.mxu0 %v618
    %675 = vmatprep.subr.mxu0 0.0
    %676 = vmatpush1.msra.mxu0 %v619
    %677 = vmatprep.subr.mxu0 0.0
    %678 = vmatpush1.msra.mxu0 %v620
    %679 = vmatprep.subr.mxu0 0.0
    %680 = vmatpush1.msra.mxu0 %v621
    %681 = vmatprep.subr.mxu0 0.0
    %682 = vmatpush1.msra.mxu0 %v622
    %683 = vmatprep.subr.mxu0 0.0
    %684 = vmatpush1.msra.mxu0 %v623
    %685 = vmatprep.subr.mxu0 0.0
    %686 = vmatpush1.msra.mxu0 %v624
    %687 = vmatprep.subr.mxu0 0.0
    %688 = vmatpush1.msra.mxu0 %v625
    %689 = vmatprep.subr.mxu0 0.0
    %690 = vmatpush1.msra.mxu0 %v626
    %691 = vmatprep.subr.mxu0 0.0
    %692 = vmatpush1.msra.mxu0 %v627
    %693 = vmatprep.subr.mxu0 0.0
    %694 = vmatpush1.msra.mxu0 %v628
    %695 = vmatprep.subr.mxu0 0.0
    %696 = vmatpush1.msra.mxu0 %v629
    %697 = vmatprep.subr.mxu0 0.0
    %698 = vmatpush1.msra.mxu0 %v630
    %699 = vmatprep.subr.mxu0 0.0
    %700 = vmatpush1.msra.mxu0 %v631
    %701 = vmatprep.subr.mxu0 0.0
    %702 = vmatpush1.msra.mxu0 %v632
    %703 = vmatprep.subr.mxu0 0.0
    %704 = vmatpush1.msra.mxu0 %v633
    %705 = vmatprep.mubr.f32.mxu0 %v599
    %706 = vmatmul.mubr.f32.gmra.mrb[0].mxu0 %v598
    %v707 = vpop.f32.mrb[0].mxu0
    %v708 = vadd.f32 %v639, %v707
    %v709 = vpop.f32.mrb[0].mxu0
    %710 = vmatprep.mubr.f32.mxu0 %v601
    %711 = vmatmul.mubr.f32.gmra.mrb[0].mxu0 %v600
    %v712 = vpop.f32.mrb[0].mxu0
    %v713 = vadd.f32 %v639, %v712
    %v714 = vpop.f32.mrb[0].mxu0
    %715 = vdwg.mxu0
    %vm716 = vcmask 31744
    %717 = vst.msk [vmem:[%s7] sm:$0xff] %vm716, %v708
    %718 = vst.msk [vmem:[%s7 + $0x8] sm:$0xff] %vm716, %v713
    // Predicated region
    $region38: #{tpu_custom_call.1} parent=1 // pred_check
      _
    $region39: #{tpu_custom_call.1} parent=1 // pred_check_branch
      %720 = sbr.rel (0) target = $region41
    $region40: #{tpu_custom_call.1} parent=1 // pred_region
      _
    $region41: #{tpu_custom_call.1} parent=1 // pred_fallthru
      _
    // Predicated region
    $region42: #{tpu_custom_call.1} parent=1 // pred_check
      _
    $region43: #{tpu_custom_call.1} parent=1 // pred_check_branch
      %722 = sbr.rel (0) target = $region45
    $region44: #{tpu_custom_call.1} parent=1 // pred_region
      _
    $region45: #{tpu_custom_call.1} parent=1 // pred_fallthru
      _
    %723 = vsyncpa [#allocation3], 1
    %724 = vsyncpa [#allocation5], 1

</llo_original>
